<compile_context>
chip_gen: v5e
topology: v5e:2x2
jax: 0.10.0
libtpu: 0.0.40
codegen_flags: <defaults>
</compile_context>

<pallas_src>
import functools

import jax
import jax.numpy as jnp
from jax.experimental import pallas as pl
from jax.experimental.pallas import tpu as pltpu

_LANES = 128


@functools.lru_cache(maxsize=None)
def _tpu_flavor():
    """(num_tensorcores, max_block_rows) chosen per TPU generation.

    Block-row budget keeps 4 double-buffered f32 input blocks + accumulators
    under the scoped-VMEM default (16 MiB v5e, 32 MiB v6e/v7x)."""
    kind = ""
    try:
        kind = jax.devices()[0].device_kind.lower()
    except Exception:
        pass
    if "v7" in kind or "7x" in kind:
        return 2, 4096          # 2 TensorCores / chip, 32 MiB scoped default
    if "v6" in kind:
        return 1, 4096          # 1 TensorCore, 32 MiB scoped default
    return 1, 2048              # v5e / unknown: conservative (16 MiB default)


def _to_tiles(arr):
    """Row-major flatten (same order as torch .view(-1)) -> lane-dense tiles.

    Returns (tiles (rows, 128), rows, tail) where tail is the <128-element
    ragged remainder (or None).  No jnp.pad: padding would copy the whole
    flattened array on this bandwidth-bound path."""
    flat = arr.reshape(-1)
    n = flat.size
    rows = n // _LANES
    rem = n - rows * _LANES
    if rem == 0:
        return flat.reshape(rows, _LANES), rows, None
    tail = flat[rows * _LANES:]
    if rows == 0:
        # Whole array smaller than one lane row: kernel sees a zero tile
        # (contributes 0); real data is folded in via the tiny tail sum.
        return jnp.zeros((1, _LANES), flat.dtype), 1, tail
    return flat[: rows * _LANES].reshape(rows, _LANES), rows, tail


def _make_kernel(*, nb_a, nb_b, br_a, br_b, acc_rows_a, acc_rows_b,
                 last_valid_a, last_valid_b, n_inner, two_d, total_cover):
    partial_a = last_valid_a != br_a
    partial_b = last_valid_b != br_b

    def _fold(sq, br, acc_rows):
        # (br, 128) -> (acc_rows, 128) with pure VPU adds (no XLU, no per-vreg
        # accumulator read-modify-write).
        if br == acc_rows:
            return sq
        return sq.reshape(br // acc_rows, acc_rows, _LANES).sum(axis=0)

    def kernel(a_ref, b_ref, c_ref, d_ref, o_ref, acc_a, acc_b):
        if two_d:
            ci = pl.program_id(0)
            ii = pl.program_id(1)
            blk = ci * n_inner + ii
            n_last = pl.num_programs(1) - 1
        else:
            ii = pl.program_id(0)
            blk = ii
            n_last = pl.num_programs(0) - 1

        @pl.when(ii == 0)
        def _():
            acc_a[...] = jnp.zeros_like(acc_a)
            acc_b[...] = jnp.zeros_like(acc_b)

        def pair(x_ref, y_ref, acc, nb, br, acc_rows, partial, last_valid):
            def body():
                diff = x_ref[...].astype(jnp.float32) - y_ref[...].astype(jnp.float32)
                sq = diff * diff
                if partial:
                    @pl.when(blk == nb - 1)       # cold path: ragged final block
                    def _():
                        row = jax.lax.broadcasted_iota(jnp.int32, (br, _LANES), 0)
                        acc[...] += _fold(jnp.where(row < last_valid, sq, 0.0),
                                          br, acc_rows)

                    @pl.when(blk != nb - 1)       # steady state: mask-free
                    def _():
                        acc[...] += _fold(sq, br, acc_rows)
                else:
                    acc[...] += _fold(sq, br, acc_rows)

            if nb < total_cover:
                # Skip all VPU + accumulator work once this pair's blocks are
                # exhausted (its clamped index_map already stops new DMAs).
                pl.when(blk < nb)(body)
            else:
                body()

        pair(a_ref, b_ref, acc_a, nb_a, br_a, acc_rows_a, partial_a, last_valid_a)
        pair(c_ref, d_ref, acc_b, nb_b, br_b, acc_rows_b, partial_b, last_valid_b)

        # One cheap cross-lane reduce of a single vreg per pair, once per core.
        @pl.when(ii == n_last)
        def _():
            o_ref[0, 0] = jnp.sum(acc_a[...])
            o_ref[0, 1] = jnp.sum(acc_b[...])

    return kernel


def _fused_sse(a, b, c, d):
    """Returns (sum((a-b)^2), sum((c-d)^2)) from one fused, pipelined kernel."""
    assert a.shape == b.shape and c.shape == d.shape
    ncores, max_rows = _tpu_flavor()

    a2, rows_a, ta = _to_tiles(a)
    b2, _, tb = _to_tiles(b)
    c2, rows_b, tc = _to_tiles(c)
    d2, _, td = _to_tiles(d)

    br_a = rows_a if rows_a <= max_rows else max_rows
    br_b = rows_b if rows_b <= max_rows else max_rows
    acc_rows_a = 8 if br_a % 8 == 0 else br_a
    acc_rows_b = 8 if br_b % 8 == 0 else br_b
    nb_a = pl.cdiv(rows_a, br_a)
    nb_b = pl.cdiv(rows_b, br_b)
    n_steps = max(nb_a, nb_b)

    two_d = ncores >= 2 and n_steps >= 2
    if two_d:
        # Real per-TensorCore split on v7x; each core owns one output row,
        # summed in JAX.  VMEM scratch accumulators are core-private.
        n_inner = pl.cdiv(n_steps, ncores)
        total_cover = ncores * n_inner
        grid = (ncores, n_inner)
        dims = (pltpu.CORE_PARALLEL, pltpu.ARBITRARY)
        out_rows = ncores

        def idx_a(ci, ii):
            return (jnp.minimum(ci * n_inner + ii, nb_a - 1), 0)

        def idx_b(ci, ii):
            return (jnp.minimum(ci * n_inner + ii, nb_b - 1), 0)

        out_spec = pl.BlockSpec((1, 2), lambda ci, ii: (ci, 0),
                                memory_space=pltpu.MemorySpace.SMEM)
    else:
        # Single-TensorCore chips (v5e/v6e): plain 1-D reduction grid, no
        # redundant outer axis.
        n_inner = n_steps
        total_cover = n_steps
        grid = (n_steps,)
        dims = ("arbitrary",)
        out_rows = 1

        def idx_a(i):
            return (jnp.minimum(i, nb_a - 1), 0)

        def idx_b(i):
            return (jnp.minimum(i, nb_b - 1), 0)

        out_spec = pl.BlockSpec((1, 2), lambda i: (0, 0),
                                memory_space=pltpu.MemorySpace.SMEM)

    kernel = _make_kernel(
        nb_a=nb_a, nb_b=nb_b, br_a=br_a, br_b=br_b,
        acc_rows_a=acc_rows_a, acc_rows_b=acc_rows_b,
        last_valid_a=rows_a - (nb_a - 1) * br_a,
        last_valid_b=rows_b - (nb_b - 1) * br_b,
        n_inner=n_inner, two_d=two_d, total_cover=total_cover)

    n_elems = (rows_a + rows_b) * _LANES
    in_bytes = sum(int(t.size) * t.dtype.itemsize for t in (a2, b2, c2, d2))
    cost = pl.CostEstimate(flops=3 * n_elems, transcendentals=0,
                           bytes_accessed=in_bytes + out_rows * 8)

    out = pl.pallas_call(
        kernel,
        out_shape=jax.ShapeDtypeStruct((out_rows, 2), jnp.float32),
        grid=grid,
        in_specs=[
            pl.BlockSpec((br_a, _LANES), idx_a),
            pl.BlockSpec((br_a, _LANES), idx_a),
            pl.BlockSpec((br_b, _LANES), idx_b),
            pl.BlockSpec((br_b, _LANES), idx_b),
        ],
        out_specs=out_spec,
        scratch_shapes=[
            pltpu.VMEM((acc_rows_a, _LANES), jnp.float32),
            pltpu.VMEM((acc_rows_b, _LANES), jnp.float32),
        ],
        compiler_params=pltpu.CompilerParams(dimension_semantics=dims),
        cost_estimate=cost,
    )(a2, b2, c2, d2)

    sse_a = jnp.sum(out[:, 0])
    sse_b = jnp.sum(out[:, 1])
    if ta is not None:
        sse_a = sse_a + jnp.sum((ta.astype(jnp.float32) - tb.astype(jnp.float32)) ** 2)
    if tc is not None:
        sse_b = sse_b + jnp.sum((tc.astype(jnp.float32) - td.astype(jnp.float32)) ** 2)
    return sse_a, sse_b


def vqvae_loss(x, x_recon, z_e, z_q, commitment_cost=0.5, use_pallas=None):
    """Matches VQVAELoss.forward -> (total, recon, codebook, commitment)."""
    if use_pallas is None:
        # For tiny inputs the fixed pallas_call / per-step overhead dominates;
        # a plain fused XLA reduction is faster there.
        total_bytes = (x.size + x_recon.size + z_e.size + z_q.size) * x.dtype.itemsize
        use_pallas = total_bytes >= (2 << 20)

    if use_pallas:
        sse_recon, sse_q = _fused_sse(x_recon, x, z_q, z_e)
        recon = sse_recon / jnp.float32(x.size)
        q_mse = sse_q / jnp.float32(z_e.size)
    else:
        recon = jnp.mean(jnp.square(x_recon.astype(jnp.float32) - x.astype(jnp.float32)))
        q_mse = jnp.mean(jnp.square(z_q.astype(jnp.float32) - z_e.astype(jnp.float32)))

    # codebook = MSE(z_q, detach(z_e)); commitment = c * MSE(detach(z_q), z_e)
    # (forward values identical; detach only affects gradients)
    codebook = q_mse
    commitment = jnp.float32(commitment_cost) * q_mse
    total = recon + jnp.float32(0.01) * codebook + jnp.float32(0.01) * commitment
    return total, recon, codebook, commitment


if __name__ == "__main__":
    key = jax.random.PRNGKey(0)
    k1, k2, k3, k4 = jax.random.split(key, 4)

    # x / x_recon: image space NCHW; z_e / z_q: latent space NCHW
    x = jax.random.normal(k1, (2, 4, 16, 16), dtype=jnp.float32)
    x_recon = jax.random.normal(k2, (2, 4, 16, 16), dtype=jnp.float32)
    z_e = jax.random.normal(k3, (2, 8, 8, 8), dtype=jnp.float32)
    z_q = jax.random.normal(k4, (2, 8, 8, 8), dtype=jnp.float32)

    # Force the Pallas path (auto heuristic would route these tiny demo
    # tensors to the plain XLA reduction).
    loss_fn = jax.jit(functools.partial(vqvae_loss, use_pallas=True))
    total, recon, codebook, commitment = loss_fn(x, x_recon, z_e, z_q)
    jax.block_until_ready((total, recon, codebook, commitment))

    # reference check (pure JAX)
    recon_ref = jnp.mean((x_recon - x) ** 2)
    q_ref = jnp.mean((z_q - z_e) ** 2)
    total_ref = recon_ref + 0.01 * q_ref + 0.01 * 0.5 * q_ref
    assert jnp.allclose(recon, recon_ref, rtol=1e-5, atol=1e-5)
    assert jnp.allclose(codebook, q_ref, rtol=1e-5, atol=1e-5)
    assert jnp.allclose(commitment, 0.5 * q_ref, rtol=1e-5, atol=1e-5)
    assert jnp.allclose(total, total_ref, rtol=1e-5, atol=1e-5)

    print("KERNEL_OK")
</pallas_src>

<mosaic_0001>
module attributes {stable_mosaic.version = 11 : i64} {
  func.func @kernel(%arg0: i32, %arg1: memref<16x128xf32, #tpu.memory_space<vmem>>, %arg2: memref<16x128xf32, #tpu.memory_space<vmem>>, %arg3: memref<8x128xf32, #tpu.memory_space<vmem>>, %arg4: memref<8x128xf32, #tpu.memory_space<vmem>>, %arg5: memref<1x2xf32, #tpu.memory_space<smem>>, %arg6: memref<8x128xf32, #tpu.memory_space<vmem>>, %arg7: memref<8x128xf32, #tpu.memory_space<vmem>>) attributes {dimension_semantics = [#tpu.dimension_semantics<arbitrary>], iteration_bounds = array<i64: 1>, scalar_prefetch = 0 : i64, scratch_operands = 2 : i64, tpu.core_type = #tpu.core_type<tc>, window_params = [{transform_indices = @transform_0, window_bounds = array<i64: 16, 128>}, {transform_indices = @transform_1, window_bounds = array<i64: 16, 128>}, {transform_indices = @transform_2, window_bounds = array<i64: 8, 128>}, {transform_indices = @transform_3, window_bounds = array<i64: 8, 128>}, {transform_indices = @transform_4, window_bounds = array<i64: 1, 2>}]} {
    %c0_i32 = arith.constant 0 : i32
    %0 = arith.cmpi eq, %arg0, %c0_i32 : i32
    %1 = arith.extui %0 : i1 to i32
    %c0_i32_0 = arith.constant 0 : i32
    %2 = arith.cmpi ne, %1, %c0_i32_0 : i32
    scf.if %2 {
      %cst_18 = arith.constant 0.000000e+00 : f32
      %22 = vector.broadcast %cst_18 : f32 to vector<8x128xf32>
      %c0_19 = arith.constant 0 : index
      %c0_20 = arith.constant 0 : index
      %23 = vector.load %arg6[%c0_19, %c0_20] : memref<8x128xf32, #tpu.memory_space<vmem>>, vector<8x128xf32>
      tpu.vector_store %arg6[%c0_19, %c0_20], %22 {strides = array<i32>} : memref<8x128xf32, #tpu.memory_space<vmem>>, vector<8x128xf32>,
      %cst_21 = arith.constant 0.000000e+00 : f32
      %24 = vector.broadcast %cst_21 : f32 to vector<8x128xf32>
      %c0_22 = arith.constant 0 : index
      %c0_23 = arith.constant 0 : index
      %25 = vector.load %arg7[%c0_22, %c0_23] : memref<8x128xf32, #tpu.memory_space<vmem>>, vector<8x128xf32>
      tpu.vector_store %arg7[%c0_22, %c0_23], %24 {strides = array<i32>} : memref<8x128xf32, #tpu.memory_space<vmem>>, vector<8x128xf32>,
    } else {
    }
    %c0 = arith.constant 0 : index
    %c0_1 = arith.constant 0 : index
    %3 = vector.load %arg1[%c0, %c0_1] : memref<16x128xf32, #tpu.memory_space<vmem>>, vector<16x128xf32>
    %c0_2 = arith.constant 0 : index
    %c0_3 = arith.constant 0 : index
    %4 = vector.load %arg2[%c0_2, %c0_3] : memref<16x128xf32, #tpu.memory_space<vmem>>, vector<16x128xf32>
    %5 = arith.subf %3, %4 : vector<16x128xf32>
    %6 = arith.mulf %5, %5 : vector<16x128xf32>
    %c0_4 = arith.constant 0 : index
    %c0_5 = arith.constant 0 : index
    %7 = vector.load %arg6[%c0_4, %c0_5] : memref<8x128xf32, #tpu.memory_space<vmem>>, vector<8x128xf32>
    %8 = vector.shape_cast %6 : vector<16x128xf32> to vector<2x8x128xf32>
    %cst = arith.constant dense<0.000000e+00> : vector<8x128xf32>
    %9 = vector.multi_reduction <add>, %8, %cst [0] : vector<2x8x128xf32> to vector<8x128xf32>
    %10 = arith.addf %7, %9 : vector<8x128xf32>
    %c0_6 = arith.constant 0 : index
    %c0_7 = arith.constant 0 : index
    %11 = vector.load %arg6[%c0_6, %c0_7] : memref<8x128xf32, #tpu.memory_space<vmem>>, vector<8x128xf32>
    tpu.vector_store %arg6[%c0_6, %c0_7], %10 {strides = array<i32>} : memref<8x128xf32, #tpu.memory_space<vmem>>, vector<8x128xf32>,
    %c0_8 = arith.constant 0 : index
    %c0_9 = arith.constant 0 : index
    %12 = vector.load %arg3[%c0_8, %c0_9] : memref<8x128xf32, #tpu.memory_space<vmem>>, vector<8x128xf32>
    %c0_10 = arith.constant 0 : index
    %c0_11 = arith.constant 0 : index
    %13 = vector.load %arg4[%c0_10, %c0_11] : memref<8x128xf32, #tpu.memory_space<vmem>>, vector<8x128xf32>
    %14 = arith.subf %12, %13 : vector<8x128xf32>
    %15 = arith.mulf %14, %14 : vector<8x128xf32>
    %c0_12 = arith.constant 0 : index
    %c0_13 = arith.constant 0 : index
    %16 = vector.load %arg7[%c0_12, %c0_13] : memref<8x128xf32, #tpu.memory_space<vmem>>, vector<8x128xf32>
    %17 = arith.addf %16, %15 : vector<8x128xf32>
    %c0_14 = arith.constant 0 : index
    %c0_15 = arith.constant 0 : index
    %18 = vector.load %arg7[%c0_14, %c0_15] : memref<8x128xf32, #tpu.memory_space<vmem>>, vector<8x128xf32>
    tpu.vector_store %arg7[%c0_14, %c0_15], %17 {strides = array<i32>} : memref<8x128xf32, #tpu.memory_space<vmem>>, vector<8x128xf32>,
    %c0_i32_16 = arith.constant 0 : i32
    %19 = arith.cmpi eq, %arg0, %c0_i32_16 : i32
    %20 = arith.extui %19 : i1 to i32
    %c0_i32_17 = arith.constant 0 : i32
    %21 = arith.cmpi ne, %20, %c0_i32_17 : i32
    scf.if %21 {
      %c0_18 = arith.constant 0 : index
      %c0_19 = arith.constant 0 : index
      %22 = vector.load %arg6[%c0_18, %c0_19] : memref<8x128xf32, #tpu.memory_space<vmem>>, vector<8x128xf32>
      %23 = vector.shape_cast %22 : vector<8x128xf32> to vector<1x8x128xf32>
      %cst_20 = arith.constant dense<0.000000e+00> : vector<1xf32>
      %24 = vector.multi_reduction <add>, %23, %cst_20 [1, 2] : vector<1x8x128xf32> to vector<1xf32>
      %25 = vector.shape_cast %24 : vector<1xf32> to vector<1x1x1xf32>
      %26 = vector.extract %25[0, 0, 0] : f32 from vector<1x1x1xf32>
      %c0_21 = arith.constant 0 : index
      %c0_22 = arith.constant 0 : index
      %27 = memref.load %arg5[%c0_21, %c0_22] : memref<1x2xf32, #tpu.memory_space<smem>>
      memref.store %26, %arg5[%c0_21, %c0_22] : memref<1x2xf32, #tpu.memory_space<smem>>
      %c0_23 = arith.constant 0 : index
      %c0_24 = arith.constant 0 : index
      %28 = vector.load %arg7[%c0_23, %c0_24] : memref<8x128xf32, #tpu.memory_space<vmem>>, vector<8x128xf32>
      %29 = vector.shape_cast %28 : vector<8x128xf32> to vector<1x8x128xf32>
      %cst_25 = arith.constant dense<0.000000e+00> : vector<1xf32>
      %30 = vector.multi_reduction <add>, %29, %cst_25 [1, 2] : vector<1x8x128xf32> to vector<1xf32>
      %31 = vector.shape_cast %30 : vector<1xf32> to vector<1x1x1xf32>
      %32 = vector.extract %31[0, 0, 0] : f32 from vector<1x1x1xf32>
      %c0_26 = arith.constant 0 : index
      %c1 = arith.constant 1 : index
      %33 = memref.load %arg5[%c0_26, %c1] : memref<1x2xf32, #tpu.memory_space<smem>>
      memref.store %32, %arg5[%c0_26, %c1] : memref<1x2xf32, #tpu.memory_space<smem>>
    } else {
    }
    return
  }
  func.func @transform_0(%arg0: i32) -> (i32, i32) {
    %c0_i32 = arith.constant 0 : i32
    %0 = arith.minsi %arg0, %c0_i32 : i32
    %c0_i32_0 = arith.constant 0 : i32
    %c0_i32_1 = arith.constant 0 : i32
    return %0, %c0_i32_0 : i32, i32
  }
  func.func @transform_1(%arg0: i32) -> (i32, i32) {
    %c0_i32 = arith.constant 0 : i32
    %0 = arith.minsi %arg0, %c0_i32 : i32
    %c0_i32_0 = arith.constant 0 : i32
    %c0_i32_1 = arith.constant 0 : i32
    return %0, %c0_i32_0 : i32, i32
  }
  func.func @transform_2(%arg0: i32) -> (i32, i32) {
    %c0_i32 = arith.constant 0 : i32
    %0 = arith.minsi %arg0, %c0_i32 : i32
    %c0_i32_0 = arith.constant 0 : i32
    %c0_i32_1 = arith.constant 0 : i32
    return %0, %c0_i32_0 : i32, i32
  }
  func.func @transform_3(%arg0: i32) -> (i32, i32) {
    %c0_i32 = arith.constant 0 : i32
    %0 = arith.minsi %arg0, %c0_i32 : i32
    %c0_i32_0 = arith.constant 0 : i32
    %c0_i32_1 = arith.constant 0 : i32
    return %0, %c0_i32_0 : i32, i32
  }
  func.func @transform_4(%arg0: i32) -> (i32, i32) {
    %c0_i32 = arith.constant 0 : i32
    %c0_i32_0 = arith.constant 0 : i32
    %c0_i32_1 = arith.constant 0 : i32
    return %c0_i32, %c0_i32_0 : i32, i32
  }
}

</mosaic_0001>

<llo_original>
// kernel: vqvae_loss.1
$region0: #{vqvae_loss.1}
  #allocation0 [shape = 'u32[]', space=smem, size = 0x4, offset = 0x4, fixed_abs, tag = 'smem constant byte address 0x4 - core index']
  #allocation1 [shape = 'u32[72,128]{1,0:T(1,128)}', space=vmem, size = 0x9000, scoped, tag = 'internal scratch']
  #allocation2 [shape = 'f32[8,128]{1,0:T(8,128)}', space=vmem, size = 0x1000, scoped, tag = 'scratch operand']
  #allocation3 [shape = 'f32[8,128]{1,0:T(8,128)}', space=vmem, size = 0x1000, scoped, tag = 'scratch operand']
  %s0 = inlined_call_operand.vmem [shape: f32[16,128], index: 0, kind: input, shape index: {}]
  %s1 = inlined_call_operand.vmem [shape: f32[16,128], index: 1, kind: input, shape index: {}]
  %s2 = inlined_call_operand.vmem [shape: f32[8,128], index: 2, kind: input, shape index: {}]
  %s3 = inlined_call_operand.vmem [shape: f32[8,128], index: 3, kind: input, shape index: {}]
  %s4 = inlined_call_operand.vmem [shape: f32[1,2], index: 4, kind: output, shape index: {}]
  %s5 = sld [smem:[#allocation0]]
  $region34: #{vqvae_loss.1} parent=0
    _
  %s7 = ssub.s32 1, %s5
  %s8 = scalar_select 0, %s7, %s5
  $region1: #{vqvae_loss.1} parent=0
    #allocation4 [shape = 'u8[512]{0}', space=smem, size = 0x200, scoped, tag = 'output window, operand 0, single buffered']
    #allocation5 [shape = 's32[1]{0}', space=sflag, size = 0x4, scoped, tag = 'scoped memory for vqvae_loss.1']
    %9 = vsyncpa [#allocation5], 0
    // Predicated region
    $region2: #{vqvae_loss.1} parent=1 // pred_check
      _
    $region3: #{vqvae_loss.1} parent=1 // pred_check_branch
      %11 = sbr.rel (0) target = $region5
    $region4: #{vqvae_loss.1} parent=1 // pred_region
      _
    $region5: #{vqvae_loss.1} parent=1 // pred_fallthru
      _
    // Predicated region
    $region6: #{vqvae_loss.1} parent=1 // pred_check
      _
    $region7: #{vqvae_loss.1} parent=1 // pred_check_branch
      %13 = sbr.rel (0) target = $region9
    $region8: #{vqvae_loss.1} parent=1 // pred_region
      _
    $region9: #{vqvae_loss.1} parent=1 // pred_fallthru
      _
    // Predicated region
    $region10: #{vqvae_loss.1} parent=1 // pred_check
      _
    $region11: #{vqvae_loss.1} parent=1 // pred_check_branch
      %15 = sbr.rel (0) target = $region13
    $region12: #{vqvae_loss.1} parent=1 // pred_region
      _
    $region13: #{vqvae_loss.1} parent=1 // pred_fallthru
      _
    // Predicated region
    $region14: #{vqvae_loss.1} parent=1 // pred_check
      _
    $region15: #{vqvae_loss.1} parent=1 // pred_check_branch
      %17 = sbr.rel (0) target = $region17
    $region16: #{vqvae_loss.1} parent=1 // pred_region
      _
    $region17: #{vqvae_loss.1} parent=1 // pred_fallthru
      _
    %p18 = scmp.eq.s32.totalorder 0, 0
    // Predicated region
    $region18: #{vqvae_loss.1} parent=1 // pred_check
      %p19 = pneg %p18
    $region19: #{vqvae_loss.1} parent=1 // pred_check_branch
      %21 = sbr.rel (%p19) target = $region21
    $region20: #{vqvae_loss.1} parent=1 // pred_region
      %22 = vst [vmem:[#allocation2] sm:$0xff] 0.0
      %23 = vst [vmem:[#allocation3] sm:$0xff] 0.0
    $region21: #{vqvae_loss.1} parent=1 // pred_fallthru
      _
    %v24 = vld [vmem:[%s0] sm:$0xff]
    %v25 = vld [vmem:[%s0 + $0x8] sm:$0xff]
    %v26 = vld [vmem:[%s1] sm:$0xff]
    %v27 = vld [vmem:[%s1 + $0x8] sm:$0xff]
    %v28 = vsub.f32 %v24, %v26
    %v29 = vsub.f32 %v25, %v27
    %v30 = vmul.f32 %v28, %v28
    %v31 = vmul.f32 %v29, %v29
    %v32 = vld [vmem:[#allocation2] sm:$0xff]
    %v33 = vadd.f32 %v30, %v31
    %v34 = vadd.f32 %v32, %v33
    %35 = vst [vmem:[#allocation2] sm:$0xff] %v34
    %v36 = vld [vmem:[%s2] sm:$0xff]
    %v37 = vld [vmem:[%s3] sm:$0xff]
    %v38 = vsub.f32 %v36, %v37
    %v39 = vmul.f32 %v38, %v38
    %v40 = vld [vmem:[#allocation3] sm:$0xff]
    %v41 = vadd.f32 %v40, %v39
    %42 = vst [vmem:[#allocation3] sm:$0xff] %v41
    // Predicated region
    $region22: #{vqvae_loss.1} parent=1 // pred_check
      %p43 = pneg %p18
    $region23: #{vqvae_loss.1} parent=1 // pred_check_branch
      %45 = sbr.rel (%p43) target = $region25
    $region24: #{vqvae_loss.1} parent=1 // pred_region
      %v46 = vld [vmem:[#allocation2] sm:$0xff]
      %47 = vadd.xlane.f32.xlu0 %v46
      %v48 = vpop.xlane.xlu0 %47
      %v49 = vrot.slane %v48, 4
      %v50 = vadd.f32 %v48, %v49
      %v51 = vrot.slane %v50, 2
      %v52 = vadd.f32 %v50, %v51
      %v53 = vrot.slane %v52, 1
      %v54 = vadd.f32 %v52, %v53
      %s55 = vtos %v54
      %s56 = scalar_lea.smem [#allocation4], 0
      %57 = sst [smem:[%s56]] %s55
      %v58 = vld [vmem:[#allocation3] sm:$0xff]
      %59 = vadd.xlane.f32.xlu0 %v58
      %v60 = vpop.xlane.xlu0 %59
      %v61 = vrot.slane %v60, 4
      %v62 = vadd.f32 %v60, %v61
      %v63 = vrot.slane %v62, 2
      %v64 = vadd.f32 %v62, %v63
      %v65 = vrot.slane %v64, 1
      %v66 = vadd.f32 %v64, %v65
      %s67 = vtos %v66
      %s68 = scalar_lea.smem [#allocation4], 1
      %69 = sst [smem:[%s68]] %s67
    $region25: #{vqvae_loss.1} parent=1 // pred_fallthru
      _
    // Predicated region
    $region26: #{vqvae_loss.1} parent=1 // pred_check
      _
    $region27: #{vqvae_loss.1} parent=1 // pred_check_branch
      %71 = sbr.rel (0) target = $region29
    $region28: #{vqvae_loss.1} parent=1 // pred_region
      %73 = vsyncadd [#allocation5], 0
      %s75 = sshll.u32 %s4, 4
      %s76 = int_to_ptr.vmem [resolvable:$true] %s75
      %78 = dma.smem_to_vmem [#allocation4], 16, %s76, [#allocation5]
    $region29: #{vqvae_loss.1} parent=1 // pred_fallthru
      _
    // Predicated region
    $region30: #{vqvae_loss.1} parent=1 // pred_check
      _
    $region31: #{vqvae_loss.1} parent=1 // pred_check_branch
      %80 = sbr.rel (0) target = $region33
    $region32: #{vqvae_loss.1} parent=1 // pred_region
      %82 = dma.done [#allocation5], 16
    $region33: #{vqvae_loss.1} parent=1 // pred_fallthru
      _
    %83 = sfence
    %84 = vsyncpa [#allocation5], 1

</llo_original>
